<compile_context>
chip_gen: v5e
topology: v5e:2x2
jax: 0.10.0
libtpu: 0.0.40
codegen_flags: <defaults>
</compile_context>

<pallas_src>
import functools

import jax
import jax.numpy as jnp
from jax.experimental import pallas as pl
from jax.experimental.pallas import tpu as pltpu

DROPOUT_P = 0.2
_DROP_SCALE = 1.0 / (1.0 - DROPOUT_P)                 # inverted-dropout scale
_DROP_THRESHOLD = int(DROPOUT_P * (1 << 32))          # keep iff bits >= threshold


def _round_up(n, m):
    return ((n + m - 1) // m) * m


def _mlp_kernel(*refs, training: bool):
    """Fused (dropout) + linear1 + ReLU + linear2 on one batch tile.

    training=True : refs = (bits, x, w1, b1, w2, b2, out)
    training=False: refs = (x, w1, b1, w2, b2, out)

    bits : [TB, NI_p] uint32 VMEM   (host-generated random bits)
    x    : [TB, NI_p]        VMEM
    w1   : [NI_p, H_p]       VMEM   (resident across grid steps)
    b1   : [1, H_p]          VMEM
    w2   : [H_p, NO_p]       VMEM
    b2   : [1, NO_p]         VMEM
    out  : [TB, NO_p]        VMEM   (lane-dense: NO_p is a multiple of 128)
    """
    if training:
        bits_ref, x_ref, w1_ref, b1_ref, w2_ref, b2_ref, o_ref = refs
    else:
        x_ref, w1_ref, b1_ref, w2_ref, b2_ref, o_ref = refs

    x = x_ref[...]                                    # native dtype, no upcast

    if training:
        # Integer-domain keep test: drop with prob p, scale survivors by 1/(1-p).
        keep = bits_ref[...] >= jnp.uint32(_DROP_THRESHOLD)
        x = jnp.where(keep, x * _DROP_SCALE, 0.0)

    # linear1 + ReLU  (MXU matmul, f32 accumulation only)
    h = jnp.dot(x, w1_ref[...], preferred_element_type=jnp.float32) + b1_ref[...]
    h = jnp.maximum(h, 0.0)

    # linear2 (feed MXU in the weight dtype; f32 accumulation)
    out = jnp.dot(h.astype(w2_ref.dtype), w2_ref[...],
                  preferred_element_type=jnp.float32) + b2_ref[...]
    o_ref[...] = out.astype(o_ref.dtype)


def mlp_forward(x, w1, b1, w2, b2, *, training=True, rng_key=None,
                batch_tile=256):
    """Runs MyModule.forward as one Pallas call.

    x  : [B, NI]
    w1 : [NI, H]   (transposed vs. PyTorch nn.Linear.weight)
    b1 : [H]
    w2 : [H, NO]
    b2 : [NO]
    """
    B, NI = x.shape
    H = w1.shape[1]
    NO = w2.shape[1]

    # Lane-dense padding of feature dims; sublane/tile-friendly batch padding.
    NI_p = _round_up(NI, 128)
    H_p = _round_up(H, 128)
    NO_p = _round_up(NO, 128)
    TB = min(batch_tile, _round_up(B, 8))             # multiple of 8
    B_p = _round_up(B, TB)
    num_tiles = B_p // TB

    x_p = jnp.pad(x, ((0, B_p - B), (0, NI_p - NI)))
    w1_p = jnp.pad(w1, ((0, NI_p - NI), (0, H_p - H)))
    b1_p = jnp.pad(b1, (0, H_p - H)).reshape(1, H_p)
    w2_p = jnp.pad(w2, ((0, H_p - H), (0, NO_p - NO)))
    b2_p = jnp.pad(b2, (0, NO_p - NO)).reshape(1, NO_p)

    in_specs = [
        pl.BlockSpec((TB, NI_p), lambda i: (i, 0)),    # x: tiled over batch
        pl.BlockSpec((NI_p, H_p), lambda i: (0, 0)),   # w1: resident
        pl.BlockSpec((1, H_p), lambda i: (0, 0)),      # b1
        pl.BlockSpec((H_p, NO_p), lambda i: (0, 0)),   # w2: resident
        pl.BlockSpec((1, NO_p), lambda i: (0, 0)),     # b2
    ]
    args = [x_p, w1_p, b1_p, w2_p, b2_p]

    if training:
        if rng_key is None:
            raise ValueError("training=True requires rng_key")
        # Host-generated random bits (per-element, per-tile unique since the
        # bits array is tiled exactly like x).  pltpu.prng_* is avoided so the
        # kernel also lowers under interpret mode.
        bits = jax.random.bits(rng_key, (B, NI), jnp.uint32)
        bits_p = jnp.pad(bits, ((0, B_p - B), (0, NI_p - NI)))
        in_specs.insert(0, pl.BlockSpec((TB, NI_p), lambda i: (i, 0)))
        args.insert(0, bits_p)

    kernel = functools.partial(_mlp_kernel, training=training)

    out_p = pl.pallas_call(
        kernel,
        out_shape=jax.ShapeDtypeStruct((B_p, NO_p), x.dtype),
        grid=(num_tiles,),
        in_specs=in_specs,
        out_specs=pl.BlockSpec((TB, NO_p), lambda i: (i, 0)),
        compiler_params=pltpu.CompilerParams(
            # batch axis is embarrassingly parallel -> lets v7x use both TCs;
            # no-op on single-TC v5e/v6e.
            dimension_semantics=("parallel",)),
    )(*args)

    return out_p[:B, :NO]


def init_params(key, num_inputs, hidden_size, num_outputs):
    """Init mirroring nn.Linear defaults (U[-1/sqrt(fan_in), 1/sqrt(fan_in)])."""
    k1, k2, k3, k4 = jax.random.split(key, 4)
    bound1 = 1.0 / jnp.sqrt(num_inputs)
    bound2 = 1.0 / jnp.sqrt(hidden_size)
    w1 = jax.random.uniform(k1, (num_inputs, hidden_size), jnp.float32,
                            -bound1, bound1)
    b1 = jax.random.uniform(k2, (hidden_size,), jnp.float32, -bound1, bound1)
    w2 = jax.random.uniform(k3, (hidden_size, num_outputs), jnp.float32,
                            -bound2, bound2)
    b2 = jax.random.uniform(k4, (num_outputs,), jnp.float32, -bound2, bound2)
    return w1, b1, w2, b2


if __name__ == "__main__":
    # Shapes implied by the module: batch=8, num_inputs=32, hidden=32, num_outputs=8
    batch, num_inputs, hidden_size, num_outputs = 8, 32, 32, 8

    key = jax.random.PRNGKey(0)
    kx, kp, kd = jax.random.split(key, 3)
    x = jax.random.normal(kx, (batch, num_inputs), jnp.float32)
    w1, b1, w2, b2 = init_params(kp, num_inputs, hidden_size, num_outputs)

    # Training-mode forward (dropout active, deterministic given kd).
    out_train = mlp_forward(x, w1, b1, w2, b2, training=True, rng_key=kd)
    jax.block_until_ready(out_train)

    # Eval-mode forward (dropout = identity).
    out_eval = mlp_forward(x, w1, b1, w2, b2, training=False)
    jax.block_until_ready(out_eval)

    # Pure-JAX references.
    ref_eval = jnp.maximum(x @ w1 + b1, 0.0) @ w2 + b2

    bits_ref = jax.random.bits(kd, (batch, num_inputs), jnp.uint32)
    keep_ref = bits_ref >= jnp.uint32(_DROP_THRESHOLD)
    x_drop = jnp.where(keep_ref, x * _DROP_SCALE, 0.0)
    ref_train = jnp.maximum(x_drop @ w1 + b1, 0.0) @ w2 + b2

    assert out_train.shape == (batch, num_outputs)
    assert out_eval.shape == (batch, num_outputs)
    assert jnp.allclose(out_eval, ref_eval, atol=1e-4, rtol=1e-4), "eval mismatch"
    assert jnp.allclose(out_train, ref_train, atol=1e-4, rtol=1e-4), "train mismatch"

    print("KERNEL_OK")
</pallas_src>

<mosaic_0001>
module attributes {stable_mosaic.version = 11 : i64} {
  func.func @_mlp_kernel(%arg0: i32, %arg1: memref<8x128xi32, #tpu.memory_space<vmem>>, %arg2: memref<8x128xf32, #tpu.memory_space<vmem>>, %arg3: memref<128x128xf32, #tpu.memory_space<vmem>>, %arg4: memref<1x128xf32, #tpu.memory_space<vmem>>, %arg5: memref<128x128xf32, #tpu.memory_space<vmem>>, %arg6: memref<1x128xf32, #tpu.memory_space<vmem>>, %arg7: memref<8x128xf32, #tpu.memory_space<vmem>>) attributes {dimension_semantics = [#tpu.dimension_semantics<parallel>], iteration_bounds = array<i64: 1>, scalar_prefetch = 0 : i64, scratch_operands = 0 : i64, tpu.core_type = #tpu.core_type<tc>, window_params = [{transform_indices = @transform_0, window_bounds = array<i64: 8, 128>}, {transform_indices = @transform_1, window_bounds = array<i64: 8, 128>}, {pipeline_mode = #tpu.pipeline_mode<synchronous>, transform_indices = @transform_2, window_bounds = array<i64: 128, 128>}, {pipeline_mode = #tpu.pipeline_mode<synchronous>, transform_indices = @transform_3, window_bounds = array<i64: 1, 128>}, {pipeline_mode = #tpu.pipeline_mode<synchronous>, transform_indices = @transform_4, window_bounds = array<i64: 128, 128>}, {pipeline_mode = #tpu.pipeline_mode<synchronous>, transform_indices = @transform_5, window_bounds = array<i64: 1, 128>}, {transform_indices = @transform_6, window_bounds = array<i64: 8, 128>}]} {
    %c0 = arith.constant 0 : index
    %c0_0 = arith.constant 0 : index
    %0 = vector.load %arg2[%c0, %c0_0] : memref<8x128xf32, #tpu.memory_space<vmem>>, vector<8x128xf32>
    %c0_1 = arith.constant 0 : index
    %c0_2 = arith.constant 0 : index
    %1 = vector.load %arg1[%c0_1, %c0_2] : memref<8x128xi32, #tpu.memory_space<vmem>>, vector<8x128xi32>
    %c858993459_i32 = arith.constant 858993459 : i32
    %2 = vector.broadcast %c858993459_i32 : i32 to vector<8x128xi32>
    %3 = arith.cmpi uge, %1, %2 : vector<8x128xi32>
    %cst = arith.constant 1.250000e+00 : f32
    %4 = vector.broadcast %cst : f32 to vector<8x128xf32>
    %5 = arith.mulf %0, %4 : vector<8x128xf32>
    %cst_3 = arith.constant 0.000000e+00 : f32
    %6 = vector.broadcast %cst_3 : f32 to vector<8x128xf32>
    %7 = arith.select %3, %5, %6 : vector<8x128xi1>, vector<8x128xf32>
    %c0_4 = arith.constant 0 : index
    %c0_5 = arith.constant 0 : index
    %8 = vector.load %arg3[%c0_4, %c0_5] : memref<128x128xf32, #tpu.memory_space<vmem>>, vector<128x128xf32>
    %cst_6 = arith.constant dense<0.000000e+00> : vector<8x128xf32>
    %9 = tpu.matmul %7, %8, %cst_6 {dimension_numbers = #tpu.dot_dimension_numbers<[1], [0], [0], [1], [0, 0, 1, 1], [], []>} : vector<8x128xf32>, vector<128x128xf32>, vector<8x128xf32> -> vector<8x128xf32>
    %c0_7 = arith.constant 0 : index
    %c0_8 = arith.constant 0 : index
    %10 = vector.load %arg4[%c0_7, %c0_8] : memref<1x128xf32, #tpu.memory_space<vmem>>, vector<1x128xf32>
    %11 = vector.broadcast %10 : vector<1x128xf32> to vector<8x128xf32>
    %12 = arith.addf %9, %11 : vector<8x128xf32>
    %cst_9 = arith.constant 0.000000e+00 : f32
    %13 = vector.broadcast %cst_9 : f32 to vector<8x128xf32>
    %14 = arith.maximumf %12, %13 : vector<8x128xf32>
    %c0_10 = arith.constant 0 : index
    %c0_11 = arith.constant 0 : index
    %15 = vector.load %arg5[%c0_10, %c0_11] : memref<128x128xf32, #tpu.memory_space<vmem>>, vector<128x128xf32>
    %cst_12 = arith.constant dense<0.000000e+00> : vector<8x128xf32>
    %16 = tpu.matmul %14, %15, %cst_12 {dimension_numbers = #tpu.dot_dimension_numbers<[1], [0], [0], [1], [0, 0, 1, 1], [], []>} : vector<8x128xf32>, vector<128x128xf32>, vector<8x128xf32> -> vector<8x128xf32>
    %c0_13 = arith.constant 0 : index
    %c0_14 = arith.constant 0 : index
    %17 = vector.load %arg6[%c0_13, %c0_14] : memref<1x128xf32, #tpu.memory_space<vmem>>, vector<1x128xf32>
    %18 = vector.broadcast %17 : vector<1x128xf32> to vector<8x128xf32>
    %19 = arith.addf %16, %18 : vector<8x128xf32>
    %c0_15 = arith.constant 0 : index
    %c0_16 = arith.constant 0 : index
    %20 = vector.load %arg7[%c0_15, %c0_16] : memref<8x128xf32, #tpu.memory_space<vmem>>, vector<8x128xf32>
    tpu.vector_store %arg7[%c0_15, %c0_16], %19 {strides = array<i32>} : memref<8x128xf32, #tpu.memory_space<vmem>>, vector<8x128xf32>,
    return
  }
  func.func @transform_0(%arg0: i32) -> (i32, i32) {
    %c0_i32 = arith.constant 0 : i32
    %c0_i32_0 = arith.constant 0 : i32
    return %arg0, %c0_i32 : i32, i32
  }
  func.func @transform_1(%arg0: i32) -> (i32, i32) {
    %c0_i32 = arith.constant 0 : i32
    %c0_i32_0 = arith.constant 0 : i32
    return %arg0, %c0_i32 : i32, i32
  }
  func.func @transform_2(%arg0: i32) -> (i32, i32) {
    %c0_i32 = arith.constant 0 : i32
    %c0_i32_0 = arith.constant 0 : i32
    %c0_i32_1 = arith.constant 0 : i32
    return %c0_i32, %c0_i32_0 : i32, i32
  }
  func.func @transform_3(%arg0: i32) -> (i32, i32) {
    %c0_i32 = arith.constant 0 : i32
    %c0_i32_0 = arith.constant 0 : i32
    %c0_i32_1 = arith.constant 0 : i32
    return %c0_i32, %c0_i32_0 : i32, i32
  }
  func.func @transform_4(%arg0: i32) -> (i32, i32) {
    %c0_i32 = arith.constant 0 : i32
    %c0_i32_0 = arith.constant 0 : i32
    %c0_i32_1 = arith.constant 0 : i32
    return %c0_i32, %c0_i32_0 : i32, i32
  }
  func.func @transform_5(%arg0: i32) -> (i32, i32) {
    %c0_i32 = arith.constant 0 : i32
    %c0_i32_0 = arith.constant 0 : i32
    %c0_i32_1 = arith.constant 0 : i32
    return %c0_i32, %c0_i32_0 : i32, i32
  }
  func.func @transform_6(%arg0: i32) -> (i32, i32) {
    %c0_i32 = arith.constant 0 : i32
    %c0_i32_0 = arith.constant 0 : i32
    return %arg0, %c0_i32 : i32, i32
  }
}

</mosaic_0001>

<llo_original>
// kernel: tpu_custom_call.1
$region0: #{tpu_custom_call.1}
  #allocation0 [shape = 'u32[]', space=smem, size = 0x4, offset = 0x4, fixed_abs, tag = 'smem constant byte address 0x4 - core index']
  #allocation1 [shape = 'u32[72,128]{1,0:T(1,128)}', space=vmem, size = 0x9000, scoped, tag = 'internal scratch']
  %s0 = inlined_call_operand.hbm [shape: u32[8,128], index: 0, kind: input, shape index: {}]
  %s1 = inlined_call_operand.hbm [shape: f32[8,128], index: 1, kind: input, shape index: {}]
  %s2 = inlined_call_operand.hbm [shape: f32[128,128], index: 2, kind: input, shape index: {}]
  %s3 = inlined_call_operand.vmem [shape: f32[1,128], index: 3, kind: input, shape index: {}]
  %s4 = inlined_call_operand.hbm [shape: f32[128,128], index: 4, kind: input, shape index: {}]
  %s5 = inlined_call_operand.vmem [shape: f32[1,128], index: 5, kind: input, shape index: {}]
  %s6 = inlined_call_operand.hbm [shape: f32[8,128], index: 6, kind: output, shape index: {}]
  %s7 = sld [smem:[#allocation0]]
  $region50: #{tpu_custom_call.1} parent=0
    _
  %s9 = ssub.s32 1, %s7
  %s10 = scalar_select 0, %s9, %s7
  $region1: #{tpu_custom_call.1} parent=0
    #allocation2 [shape = 'u8[4096]{0}', space=vmem, size = 0x1000, scoped, tag = 'input window, operand 0, single buffered']
    #allocation3 [shape = 's32[1]{0}', space=sflag, size = 0x4, scoped, tag = 'scoped memory for tpu_custom_call.1']
    #allocation4 [shape = 's32[1]{0}', space=sflag, size = 0x4, scoped, tag = 'scoped memory for tpu_custom_call.1']
    #allocation5 [shape = 'u8[4096]{0}', space=vmem, size = 0x1000, scoped, tag = 'input window, operand 1, single buffered']
    #allocation6 [shape = 's32[1]{0}', space=sflag, size = 0x4, scoped, tag = 'scoped memory for tpu_custom_call.1']
    #allocation7 [shape = 'u8[65536]{0}', space=vmem, size = 0x10000, scoped, tag = 'input window, operand 2, single buffered']
    #allocation8 [shape = 'u8[65536]{0}', space=vmem, size = 0x10000, scoped, tag = 'input window, operand 4, single buffered']
    #allocation9 [shape = 's32[1]{0}', space=sflag, size = 0x4, scoped, tag = 'scoped memory for tpu_custom_call.1']
    #allocation10 [shape = 'u8[4096]{0}', space=vmem, size = 0x1000, scoped, tag = 'output window, operand 0, single buffered']
    %11 = vsyncpa [#allocation3], 0
    %12 = vsyncpa [#allocation6], 0
    %13 = vsyncpa [#allocation9], 0
    %14 = vsyncpa [#allocation4], 0
    // Predicated region
    $region2: #{tpu_custom_call.1} parent=1 // pred_check
      _
    $region3: #{tpu_custom_call.1} parent=1 // pred_check_branch
      %16 = sbr.rel (0) target = $region5
    $region4: #{tpu_custom_call.1} parent=1 // pred_region
      %18 = vsyncadd [#allocation3], 0
      %s20 = sshll.u32 %s0, 4
      %s21 = int_to_ptr.hbm [resolvable:$true] %s20
      %s22 = sshll.u32 [#allocation2], 4
      %s23 = int_to_ptr.vmem [resolvable:$true] %s22
      %25 = dma.hbm_to_vmem [thread:$0]  %s21, 128, %s23, [#allocation3]
    $region5: #{tpu_custom_call.1} parent=1 // pred_fallthru
      _
    // Predicated region
    $region6: #{tpu_custom_call.1} parent=1 // pred_check
      _
    $region7: #{tpu_custom_call.1} parent=1 // pred_check_branch
      %27 = sbr.rel (0) target = $region9
    $region8: #{tpu_custom_call.1} parent=1 // pred_region
      %29 = vsyncadd [#allocation6], 0
      %s31 = sshll.u32 %s1, 4
      %s32 = int_to_ptr.hbm [resolvable:$true] %s31
      %s33 = sshll.u32 [#allocation5], 4
      %s34 = int_to_ptr.vmem [resolvable:$true] %s33
      %36 = dma.hbm_to_vmem [thread:$0]  %s32, 128, %s34, [#allocation6]
    $region9: #{tpu_custom_call.1} parent=1 // pred_fallthru
      _
    // Predicated region
    $region10: #{tpu_custom_call.1} parent=1 // pred_check
      _
    $region11: #{tpu_custom_call.1} parent=1 // pred_check_branch
      %38 = sbr.rel (0) target = $region13
    $region12: #{tpu_custom_call.1} parent=1 // pred_region
      %40 = vsyncadd [#allocation6], 0
      %s41 = sshll.u32 %s2, 4
      %s42 = int_to_ptr.hbm [resolvable:$true] %s41
      %s43 = sshll.u32 [#allocation7], 4
      %s44 = int_to_ptr.vmem [resolvable:$true] %s43
      %49 = dma.hbm_to_vmem [thread:$0]  %s42, 2048, %s44, [#allocation6], 128, 128, 8
    $region13: #{tpu_custom_call.1} parent=1 // pred_fallthru
      _
    // Predicated region
    $region14: #{tpu_custom_call.1} parent=1 // pred_check
      _
    $region15: #{tpu_custom_call.1} parent=1 // pred_check_branch
      %51 = sbr.rel (0) target = $region17
    $region16: #{tpu_custom_call.1} parent=1 // pred_region
      _
    $region17: #{tpu_custom_call.1} parent=1 // pred_fallthru
      _
    // Predicated region
    $region18: #{tpu_custom_call.1} parent=1 // pred_check
      _
    $region19: #{tpu_custom_call.1} parent=1 // pred_check_branch
      %53 = sbr.rel (0) target = $region21
    $region20: #{tpu_custom_call.1} parent=1 // pred_region
      %55 = vsyncadd [#allocation9], 0
      %s56 = sshll.u32 %s4, 4
      %s57 = int_to_ptr.hbm [resolvable:$true] %s56
      %s58 = sshll.u32 [#allocation8], 4
      %s59 = int_to_ptr.vmem [resolvable:$true] %s58
      %64 = dma.hbm_to_vmem [thread:$0]  %s57, 2048, %s59, [#allocation9], 128, 128, 8
    $region21: #{tpu_custom_call.1} parent=1 // pred_fallthru
      _
    // Predicated region
    $region22: #{tpu_custom_call.1} parent=1 // pred_check
      _
    $region23: #{tpu_custom_call.1} parent=1 // pred_check_branch
      %66 = sbr.rel (0) target = $region25
    $region24: #{tpu_custom_call.1} parent=1 // pred_region
      _
    $region25: #{tpu_custom_call.1} parent=1 // pred_fallthru
      _
    // Predicated region
    $region26: #{tpu_custom_call.1} parent=1 // pred_check
      _
    $region27: #{tpu_custom_call.1} parent=1 // pred_check_branch
      %68 = sbr.rel (0) target = $region29
    $region28: #{tpu_custom_call.1} parent=1 // pred_region
      %70 = dma.done [#allocation3], 128
    $region29: #{tpu_custom_call.1} parent=1 // pred_fallthru
      _
    // Predicated region
    $region30: #{tpu_custom_call.1} parent=1 // pred_check
      _
    $region31: #{tpu_custom_call.1} parent=1 // pred_check_branch
      %72 = sbr.rel (0) target = $region33
    $region32: #{tpu_custom_call.1} parent=1 // pred_region
      %74 = dma.done [#allocation6], 128
    $region33: #{tpu_custom_call.1} parent=1 // pred_fallthru
      _
    // Predicated region
    $region34: #{tpu_custom_call.1} parent=1 // pred_check
      _
    $region35: #{tpu_custom_call.1} parent=1 // pred_check_branch
      %76 = sbr.rel (0) target = $region37
    $region36: #{tpu_custom_call.1} parent=1 // pred_region
      %78 = dma.done [#allocation6], 2048
    $region37: #{tpu_custom_call.1} parent=1 // pred_fallthru
      _
    // Predicated region
    $region38: #{tpu_custom_call.1} parent=1 // pred_check
      _
    $region39: #{tpu_custom_call.1} parent=1 // pred_check_branch
      %80 = sbr.rel (0) target = $region41
    $region40: #{tpu_custom_call.1} parent=1 // pred_region
      %82 = dma.done [#allocation9], 2048
    $region41: #{tpu_custom_call.1} parent=1 // pred_fallthru
      _
    %v83 = vld [vmem:[#allocation5] sm:$0xff]
    %v84 = vld [vmem:[#allocation2] sm:$0xff]
    %v85 = vadd.s32 %v84, 2147483648
    %vm87 = vcmp.ge.s32.totalorder %v85, 3006477107
    %v88 = vmul.f32 %v83, 1.25
    %v89 = vsel %vm87, %v88, 0.0
    %v90 = vld [vmem:[#allocation7] sm:$0xff]
    %v91 = vld [vmem:[#allocation7 + $0x8] sm:$0xff]
    %v92 = vld [vmem:[#allocation7 + $0x10] sm:$0xff]
    %v93 = vld [vmem:[#allocation7 + $0x18] sm:$0xff]
    %v94 = vld [vmem:[#allocation7 + $0x20] sm:$0xff]
    %v95 = vld [vmem:[#allocation7 + $0x28] sm:$0xff]
    %v96 = vld [vmem:[#allocation7 + $0x30] sm:$0xff]
    %v97 = vld [vmem:[#allocation7 + $0x38] sm:$0xff]
    %v98 = vld [vmem:[#allocation7 + $0x40] sm:$0xff]
    %v99 = vld [vmem:[#allocation7 + $0x48] sm:$0xff]
    %v100 = vld [vmem:[#allocation7 + $0x50] sm:$0xff]
    %v101 = vld [vmem:[#allocation7 + $0x58] sm:$0xff]
    %v102 = vld [vmem:[#allocation7 + $0x60] sm:$0xff]
    %v103 = vld [vmem:[#allocation7 + $0x68] sm:$0xff]
    %v104 = vld [vmem:[#allocation7 + $0x70] sm:$0xff]
    %v105 = vld [vmem:[#allocation7 + $0x78] sm:$0xff]
    %v106 = vld [vmem:[%s3] sm:$0x1]
    %v108 = vperm.slane %v106, 0
    %110 = vmatpush.msra.mxu0 %v105
    %111 = vmatpush.msra.mxu0 %v104
    %112 = vmatpush.msra.mxu0 %v103
    %113 = vmatpush.msra.mxu0 %v102
    %114 = vmatpush.msra.mxu0 %v101
    %115 = vmatpush.msra.mxu0 %v100
    %116 = vmatpush.msra.mxu0 %v99
    %117 = vmatpush.msra.mxu0 %v98
    %118 = vmatpush.msra.mxu0 %v97
    %119 = vmatpush.msra.mxu0 %v96
    %120 = vmatpush.msra.mxu0 %v95
    %121 = vmatpush.msra.mxu0 %v94
    %122 = vmatpush.msra.mxu0 %v93
    %123 = vmatpush.msra.mxu0 %v92
    %124 = vmatpush.msra.mxu0 %v91
    %125 = vmatpush.msra.mxu0 %v90
    %126 = vmatmul.f32.gmra.mxu0 %v89
    %v127 = vpop.f32.mrf.mxu0
    %v128 = vadd.f32 %v108, %v127
    %129 = vdwg.mxu0
    %v130 = vmax.f32 %v128, 0.0
    %v131 = vld [vmem:[#allocation8] sm:$0xff]
    %v132 = vld [vmem:[#allocation8 + $0x8] sm:$0xff]
    %v133 = vld [vmem:[#allocation8 + $0x10] sm:$0xff]
    %v134 = vld [vmem:[#allocation8 + $0x18] sm:$0xff]
    %v135 = vld [vmem:[#allocation8 + $0x20] sm:$0xff]
    %v136 = vld [vmem:[#allocation8 + $0x28] sm:$0xff]
    %v137 = vld [vmem:[#allocation8 + $0x30] sm:$0xff]
    %v138 = vld [vmem:[#allocation8 + $0x38] sm:$0xff]
    %v139 = vld [vmem:[#allocation8 + $0x40] sm:$0xff]
    %v140 = vld [vmem:[#allocation8 + $0x48] sm:$0xff]
    %v141 = vld [vmem:[#allocation8 + $0x50] sm:$0xff]
    %v142 = vld [vmem:[#allocation8 + $0x58] sm:$0xff]
    %v143 = vld [vmem:[#allocation8 + $0x60] sm:$0xff]
    %v144 = vld [vmem:[#allocation8 + $0x68] sm:$0xff]
    %v145 = vld [vmem:[#allocation8 + $0x70] sm:$0xff]
    %v146 = vld [vmem:[#allocation8 + $0x78] sm:$0xff]
    %v147 = vld [vmem:[%s5] sm:$0x1]
    %v149 = vperm.slane %v147, 0
    %151 = vmatpush.msra.mxu0 %v146
    %152 = vmatpush.msra.mxu0 %v145
    %153 = vmatpush.msra.mxu0 %v144
    %154 = vmatpush.msra.mxu0 %v143
    %155 = vmatpush.msra.mxu0 %v142
    %156 = vmatpush.msra.mxu0 %v141
    %157 = vmatpush.msra.mxu0 %v140
    %158 = vmatpush.msra.mxu0 %v139
    %159 = vmatpush.msra.mxu0 %v138
    %160 = vmatpush.msra.mxu0 %v137
    %161 = vmatpush.msra.mxu0 %v136
    %162 = vmatpush.msra.mxu0 %v135
    %163 = vmatpush.msra.mxu0 %v134
    %164 = vmatpush.msra.mxu0 %v133
    %165 = vmatpush.msra.mxu0 %v132
    %166 = vmatpush.msra.mxu0 %v131
    %167 = vmatmul.f32.gmra.mxu0 %v130
    %v168 = vpop.f32.mrf.mxu0
    %v169 = vadd.f32 %v149, %v168
    %170 = vdwg.mxu0
    %171 = vst [vmem:[#allocation10] sm:$0xff] %v169
    // Predicated region
    $region42: #{tpu_custom_call.1} parent=1 // pred_check
      _
    $region43: #{tpu_custom_call.1} parent=1 // pred_check_branch
      %173 = sbr.rel (0) target = $region45
    $region44: #{tpu_custom_call.1} parent=1 // pred_region
      %175 = vsyncadd [#allocation4], 0
      %s177 = sshll.u32 [#allocation10], 4
      %s178 = int_to_ptr.vmem [resolvable:$true] %s177
      %s179 = sshll.u32 %s6, 4
      %s180 = int_to_ptr.hbm [resolvable:$true] %s179
      %182 = dma.vmem_to_hbm [thread:$0]  %s178, 128, %s180, [#allocation4]
    $region45: #{tpu_custom_call.1} parent=1 // pred_fallthru
      _
    // Predicated region
    $region46: #{tpu_custom_call.1} parent=1 // pred_check
      _
    $region47: #{tpu_custom_call.1} parent=1 // pred_check_branch
      %184 = sbr.rel (0) target = $region49
    $region48: #{tpu_custom_call.1} parent=1 // pred_region
      %186 = dma.done [#allocation4], 128
    $region49: #{tpu_custom_call.1} parent=1 // pred_fallthru
      _
    %187 = vsyncpa [#allocation3], 1
    %188 = vsyncpa [#allocation6], 1
    %189 = vsyncpa [#allocation9], 1
    %190 = vsyncpa [#allocation4], 1

</llo_original>
